<compile_context>
chip_gen: v5e
topology: v5e:2x2
jax: 0.10.0
libtpu: 0.0.40
codegen_flags: <defaults>
</compile_context>

<pallas_src>
import numpy as np
import jax
import jax.numpy as jnp
from jax import lax
from jax.experimental import pallas as pl
from jax.experimental.pallas import tpu as pltpu


def _scan_rows(v, idx, *, n, stride):
    """Inclusive Hillis-Steele cumprod along axis 0 (sublanes) of a 2D tile.

    idx     : precomputed int32 index tile (hoisted iota, possibly modulo'd).
    n       : number of scan elements.
    stride  : row distance of one scan step (B for the block-wise x0 scan).
    The circular roll leaks rows across the wrap / block boundary, but the
    `idx >= shift` mask replaces exactly those contributions with 1.
    """
    one = jnp.ones((), v.dtype)
    k = 1
    while k < n:  # log2(n) full-tile steps
        shift = k * stride
        shifted = pltpu.roll(v, shift, axis=0)          # shifted[i] = v[i - shift]
        v = v * jnp.where(idx >= shift, shifted, one)   # fused select-into-multiplicand
        k *= 2
    return v


def _scan_lanes(v, masks):
    """Inclusive Hillis-Steele cumprod along the last (lane) axis of a 2D tile.

    masks: precomputed [(shift, bool_mask_of_shape_(1, n)), ...] shared across
    every lane scan of the same width (broadcast over rows inside the where).
    """
    one = jnp.ones((), v.dtype)
    for k, m in masks:
        shifted = pltpu.roll(v, k, axis=v.ndim - 1)     # shifted[..., j] = v[..., j - k]
        v = v * jnp.where(m, shifted, one)
    return v


def _build_fused_kernel(A, B, C, My, Ny, Lz):
    """Single gridless kernel computing all six cumprods of the model forward."""

    def kernel(x_ref, y_ref, z_ref,
               x0_ref, x1_ref, x2_ref, y0_ref, y1_ref, z0_ref):
        xv = x_ref[...]          # (A*B, C) free row-major view of x
        yv = y_ref[...]          # (My, Ny)
        zv = z_ref[...]          # (1, Lz)

        # ---- shared index / mask material (hoisted, built once) -------------
        x_row = lax.broadcasted_iota(jnp.int32, xv.shape, 0)       # (A*B, C)
        if B & (B - 1) == 0:
            x_row_in_blk = x_row & (B - 1)                         # row index within block
        else:
            x_row_in_blk = x_row % B
        y_row = lax.broadcasted_iota(jnp.int32, yv.shape, 0)       # (My, Ny)

        lane_masks = {}

        def get_lane_masks(n):
            if n not in lane_masks:
                col = lax.broadcasted_iota(jnp.int32, (1, n), 1)
                masks, k = [], 1
                while k < n:
                    masks.append((k, col >= k))
                    k *= 2
                lane_masks[n] = masks
            return lane_masks[n]

        # ---- x: cumprod over the three axes ---------------------------------
        # axis 0: scan over blocks of B rows (stride-B sublane scan).
        x0_ref[...] = _scan_rows(xv, x_row, n=A, stride=B)
        # axis 1: ONE full-tile scan, masked by row-within-block index.
        x1_ref[...] = _scan_rows(xv, x_row_in_blk, n=B, stride=1)
        # axis 2: lane-axis scan in natural layout (no transpose).
        x2_ref[...] = _scan_lanes(xv, get_lane_masks(C))

        # ---- y ---------------------------------------------------------------
        y0_ref[...] = _scan_rows(yv, y_row, n=My, stride=1)
        y1_ref[...] = _scan_lanes(yv, get_lane_masks(Ny))

        # ---- z (1, Lz): reuses the lane masks when Lz == C or Ny -------------
        z0_ref[...] = _scan_lanes(zv, get_lane_masks(Lz))

    return kernel


@jax.jit
def model_forward(x, y, z):
    """Mirrors Model.forward from tools/pnnx/tests/test_torch_cumprod.py."""
    A, B, C = x.shape
    My, Ny = y.shape
    (Lz,) = z.shape

    # Only free row-major reshapes in the wrapper -- no transposes / moveaxis.
    x2d = x.reshape(A * B, C)
    z2d = z.reshape(1, Lz)

    # Gridless call: plain VMEM memory-space specs (no block pipeline emitter).
    vmem = pl.BlockSpec(memory_space=pltpu.MemorySpace.VMEM)

    out_shape = (
        jax.ShapeDtypeStruct((A * B, C), x.dtype),  # x0 (cumprod dim 0)
        jax.ShapeDtypeStruct((A * B, C), x.dtype),  # x1 (cumprod dim 1)
        jax.ShapeDtypeStruct((A * B, C), x.dtype),  # x2 (cumprod dim 2)
        jax.ShapeDtypeStruct((My, Ny), y.dtype),    # y0 (cumprod dim 0)
        jax.ShapeDtypeStruct((My, Ny), y.dtype),    # y1 (cumprod dim 1)
        jax.ShapeDtypeStruct((1, Lz), z.dtype),     # z0 (cumprod dim 0)
    )

    x0, x1, x2, y0, y1, z0 = pl.pallas_call(
        _build_fused_kernel(A, B, C, My, Ny, Lz),
        out_shape=out_shape,
        in_specs=[vmem, vmem, vmem],
        out_specs=(vmem,) * 6,
    )(x2d, y, z2d)

    return (x0.reshape(A, B, C), x1.reshape(A, B, C), x2.reshape(A, B, C),
            y0, y1, z0.reshape(Lz))


if __name__ == "__main__":
    key = jax.random.PRNGKey(0)
    kx, ky, kz = jax.random.split(key, 3)

    # Small shapes consistent with the module: x is 3-D, y is 2-D, z is 1-D.
    # Last dim = 128 keeps every load/store lane-dense on TPU.
    x = jax.random.uniform(kx, (4, 8, 128), dtype=jnp.float32) + 0.5
    y = jax.random.uniform(ky, (16, 128), dtype=jnp.float32) + 0.5
    z = jax.random.uniform(kz, (128,), dtype=jnp.float32) + 0.5

    outs = jax.block_until_ready(model_forward(x, y, z))

    # Cross-check against the plain-JAX reference.
    refs = (
        jnp.cumprod(x, axis=0), jnp.cumprod(x, axis=1), jnp.cumprod(x, axis=2),
        jnp.cumprod(y, axis=0), jnp.cumprod(y, axis=1),
        jnp.cumprod(z, axis=0),
    )
    for o, r in zip(outs, refs):
        np.testing.assert_allclose(np.asarray(o), np.asarray(r), rtol=2e-5, atol=1e-6)

    print("KERNEL_OK")
</pallas_src>

<mosaic_0001>
module attributes {stable_mosaic.version = 11 : i64} {
  func.func @kernel(%arg0: memref<32x128xf32, #tpu.memory_space<vmem>>, %arg1: memref<16x128xf32, #tpu.memory_space<vmem>>, %arg2: memref<1x128xf32, #tpu.memory_space<vmem>>, %arg3: memref<32x128xf32, #tpu.memory_space<vmem>>, %arg4: memref<32x128xf32, #tpu.memory_space<vmem>>, %arg5: memref<32x128xf32, #tpu.memory_space<vmem>>, %arg6: memref<16x128xf32, #tpu.memory_space<vmem>>, %arg7: memref<16x128xf32, #tpu.memory_space<vmem>>, %arg8: memref<1x128xf32, #tpu.memory_space<vmem>>) attributes {dimension_semantics = [], scalar_prefetch = 0 : i64, scratch_operands = 0 : i64, tpu.core_type = #tpu.core_type<tc>} {
    %c0 = arith.constant 0 : index
    %c0_0 = arith.constant 0 : index
    %0 = vector.load %arg0[%c0, %c0_0] : memref<32x128xf32, #tpu.memory_space<vmem>>, vector<32x128xf32>
    %c0_1 = arith.constant 0 : index
    %c0_2 = arith.constant 0 : index
    %1 = vector.load %arg1[%c0_1, %c0_2] : memref<16x128xf32, #tpu.memory_space<vmem>>, vector<16x128xf32>
    %c0_3 = arith.constant 0 : index
    %c0_4 = arith.constant 0 : index
    %2 = vector.load %arg2[%c0_3, %c0_4] : memref<1x128xf32, #tpu.memory_space<vmem>>, vector<1x128xf32>
    %3 = tpu.iota {dimensions = array<i32: 0>} : vector<32x128xi32>
    %c7_i32 = arith.constant 7 : i32
    %4 = vector.broadcast %c7_i32 : i32 to vector<32x128xi32>
    %5 = arith.andi %3, %4 : vector<32x128xi32>
    %6 = tpu.iota {dimensions = array<i32: 0>} : vector<16x128xi32>
    %c8_i32 = arith.constant 8 : i32
    %7 = tpu.dynamic_rotate %0 by %c8_i32 dim 0 : vector<32x128xf32>, i32 -> vector<32x128xf32>
    %c8_i32_5 = arith.constant 8 : i32
    %8 = vector.broadcast %c8_i32_5 : i32 to vector<32x128xi32>
    %9 = arith.cmpi sge, %3, %8 : vector<32x128xi32>
    %cst = arith.constant 1.000000e+00 : f32
    %10 = vector.broadcast %cst : f32 to vector<32x128xf32>
    %11 = arith.select %9, %7, %10 : vector<32x128xi1>, vector<32x128xf32>
    %12 = arith.mulf %0, %11 : vector<32x128xf32>
    %c16_i32 = arith.constant 16 : i32
    %13 = tpu.dynamic_rotate %12 by %c16_i32 dim 0 : vector<32x128xf32>, i32 -> vector<32x128xf32>
    %c16_i32_6 = arith.constant 16 : i32
    %14 = vector.broadcast %c16_i32_6 : i32 to vector<32x128xi32>
    %15 = arith.cmpi sge, %3, %14 : vector<32x128xi32>
    %cst_7 = arith.constant 1.000000e+00 : f32
    %16 = vector.broadcast %cst_7 : f32 to vector<32x128xf32>
    %17 = arith.select %15, %13, %16 : vector<32x128xi1>, vector<32x128xf32>
    %18 = arith.mulf %12, %17 : vector<32x128xf32>
    %c0_8 = arith.constant 0 : index
    %c0_9 = arith.constant 0 : index
    %19 = vector.load %arg3[%c0_8, %c0_9] : memref<32x128xf32, #tpu.memory_space<vmem>>, vector<32x128xf32>
    tpu.vector_store %arg3[%c0_8, %c0_9], %18 {strides = array<i32>} : memref<32x128xf32, #tpu.memory_space<vmem>>, vector<32x128xf32>,
    %c1_i32 = arith.constant 1 : i32
    %20 = tpu.dynamic_rotate %0 by %c1_i32 dim 0 : vector<32x128xf32>, i32 -> vector<32x128xf32>
    %c1_i32_10 = arith.constant 1 : i32
    %21 = vector.broadcast %c1_i32_10 : i32 to vector<32x128xi32>
    %22 = arith.cmpi sge, %5, %21 : vector<32x128xi32>
    %cst_11 = arith.constant 1.000000e+00 : f32
    %23 = vector.broadcast %cst_11 : f32 to vector<32x128xf32>
    %24 = arith.select %22, %20, %23 : vector<32x128xi1>, vector<32x128xf32>
    %25 = arith.mulf %0, %24 : vector<32x128xf32>
    %c2_i32 = arith.constant 2 : i32
    %26 = tpu.dynamic_rotate %25 by %c2_i32 dim 0 : vector<32x128xf32>, i32 -> vector<32x128xf32>
    %c2_i32_12 = arith.constant 2 : i32
    %27 = vector.broadcast %c2_i32_12 : i32 to vector<32x128xi32>
    %28 = arith.cmpi sge, %5, %27 : vector<32x128xi32>
    %cst_13 = arith.constant 1.000000e+00 : f32
    %29 = vector.broadcast %cst_13 : f32 to vector<32x128xf32>
    %30 = arith.select %28, %26, %29 : vector<32x128xi1>, vector<32x128xf32>
    %31 = arith.mulf %25, %30 : vector<32x128xf32>
    %c4_i32 = arith.constant 4 : i32
    %32 = tpu.dynamic_rotate %31 by %c4_i32 dim 0 : vector<32x128xf32>, i32 -> vector<32x128xf32>
    %c4_i32_14 = arith.constant 4 : i32
    %33 = vector.broadcast %c4_i32_14 : i32 to vector<32x128xi32>
    %34 = arith.cmpi sge, %5, %33 : vector<32x128xi32>
    %cst_15 = arith.constant 1.000000e+00 : f32
    %35 = vector.broadcast %cst_15 : f32 to vector<32x128xf32>
    %36 = arith.select %34, %32, %35 : vector<32x128xi1>, vector<32x128xf32>
    %37 = arith.mulf %31, %36 : vector<32x128xf32>
    %c0_16 = arith.constant 0 : index
    %c0_17 = arith.constant 0 : index
    %38 = vector.load %arg4[%c0_16, %c0_17] : memref<32x128xf32, #tpu.memory_space<vmem>>, vector<32x128xf32>
    tpu.vector_store %arg4[%c0_16, %c0_17], %37 {strides = array<i32>} : memref<32x128xf32, #tpu.memory_space<vmem>>, vector<32x128xf32>,
    %39 = tpu.iota {dimensions = array<i32: 1>} : vector<1x128xi32>
    %c1_i32_18 = arith.constant 1 : i32
    %40 = vector.broadcast %c1_i32_18 : i32 to vector<1x128xi32>
    %41 = arith.cmpi sge, %39, %40 : vector<1x128xi32>
    %c2_i32_19 = arith.constant 2 : i32
    %42 = vector.broadcast %c2_i32_19 : i32 to vector<1x128xi32>
    %43 = arith.cmpi sge, %39, %42 : vector<1x128xi32>
    %c4_i32_20 = arith.constant 4 : i32
    %44 = vector.broadcast %c4_i32_20 : i32 to vector<1x128xi32>
    %45 = arith.cmpi sge, %39, %44 : vector<1x128xi32>
    %c8_i32_21 = arith.constant 8 : i32
    %46 = vector.broadcast %c8_i32_21 : i32 to vector<1x128xi32>
    %47 = arith.cmpi sge, %39, %46 : vector<1x128xi32>
    %c16_i32_22 = arith.constant 16 : i32
    %48 = vector.broadcast %c16_i32_22 : i32 to vector<1x128xi32>
    %49 = arith.cmpi sge, %39, %48 : vector<1x128xi32>
    %c32_i32 = arith.constant 32 : i32
    %50 = vector.broadcast %c32_i32 : i32 to vector<1x128xi32>
    %51 = arith.cmpi sge, %39, %50 : vector<1x128xi32>
    %c64_i32 = arith.constant 64 : i32
    %52 = vector.broadcast %c64_i32 : i32 to vector<1x128xi32>
    %53 = arith.cmpi sge, %39, %52 : vector<1x128xi32>
    %c1_i32_23 = arith.constant 1 : i32
    %54 = tpu.dynamic_rotate %0 by %c1_i32_23 dim 1 : vector<32x128xf32>, i32 -> vector<32x128xf32>
    %cst_24 = arith.constant 1.000000e+00 : f32
    %55 = vector.shape_cast %41 : vector<1x128xi1> to vector<1x128xi1>
    %56 = vector.broadcast %55 : vector<1x128xi1> to vector<32x128xi1>
    %57 = vector.broadcast %cst_24 : f32 to vector<32x128xf32>
    %58 = arith.select %56, %54, %57 : vector<32x128xi1>, vector<32x128xf32>
    %59 = arith.mulf %0, %58 : vector<32x128xf32>
    %c2_i32_25 = arith.constant 2 : i32
    %60 = tpu.dynamic_rotate %59 by %c2_i32_25 dim 1 : vector<32x128xf32>, i32 -> vector<32x128xf32>
    %cst_26 = arith.constant 1.000000e+00 : f32
    %61 = vector.shape_cast %43 : vector<1x128xi1> to vector<1x128xi1>
    %62 = vector.broadcast %61 : vector<1x128xi1> to vector<32x128xi1>
    %63 = vector.broadcast %cst_26 : f32 to vector<32x128xf32>
    %64 = arith.select %62, %60, %63 : vector<32x128xi1>, vector<32x128xf32>
    %65 = arith.mulf %59, %64 : vector<32x128xf32>
    %c4_i32_27 = arith.constant 4 : i32
    %66 = tpu.dynamic_rotate %65 by %c4_i32_27 dim 1 : vector<32x128xf32>, i32 -> vector<32x128xf32>
    %cst_28 = arith.constant 1.000000e+00 : f32
    %67 = vector.shape_cast %45 : vector<1x128xi1> to vector<1x128xi1>
    %68 = vector.broadcast %67 : vector<1x128xi1> to vector<32x128xi1>
    %69 = vector.broadcast %cst_28 : f32 to vector<32x128xf32>
    %70 = arith.select %68, %66, %69 : vector<32x128xi1>, vector<32x128xf32>
    %71 = arith.mulf %65, %70 : vector<32x128xf32>
    %c8_i32_29 = arith.constant 8 : i32
    %72 = tpu.dynamic_rotate %71 by %c8_i32_29 dim 1 : vector<32x128xf32>, i32 -> vector<32x128xf32>
    %cst_30 = arith.constant 1.000000e+00 : f32
    %73 = vector.shape_cast %47 : vector<1x128xi1> to vector<1x128xi1>
    %74 = vector.broadcast %73 : vector<1x128xi1> to vector<32x128xi1>
    %75 = vector.broadcast %cst_30 : f32 to vector<32x128xf32>
    %76 = arith.select %74, %72, %75 : vector<32x128xi1>, vector<32x128xf32>
    %77 = arith.mulf %71, %76 : vector<32x128xf32>
    %c16_i32_31 = arith.constant 16 : i32
    %78 = tpu.dynamic_rotate %77 by %c16_i32_31 dim 1 : vector<32x128xf32>, i32 -> vector<32x128xf32>
    %cst_32 = arith.constant 1.000000e+00 : f32
    %79 = vector.shape_cast %49 : vector<1x128xi1> to vector<1x128xi1>
    %80 = vector.broadcast %79 : vector<1x128xi1> to vector<32x128xi1>
    %81 = vector.broadcast %cst_32 : f32 to vector<32x128xf32>
    %82 = arith.select %80, %78, %81 : vector<32x128xi1>, vector<32x128xf32>
    %83 = arith.mulf %77, %82 : vector<32x128xf32>
    %c32_i32_33 = arith.constant 32 : i32
    %84 = tpu.dynamic_rotate %83 by %c32_i32_33 dim 1 : vector<32x128xf32>, i32 -> vector<32x128xf32>
    %cst_34 = arith.constant 1.000000e+00 : f32
    %85 = vector.shape_cast %51 : vector<1x128xi1> to vector<1x128xi1>
    %86 = vector.broadcast %85 : vector<1x128xi1> to vector<32x128xi1>
    %87 = vector.broadcast %cst_34 : f32 to vector<32x128xf32>
    %88 = arith.select %86, %84, %87 : vector<32x128xi1>, vector<32x128xf32>
    %89 = arith.mulf %83, %88 : vector<32x128xf32>
    %c64_i32_35 = arith.constant 64 : i32
    %90 = tpu.dynamic_rotate %89 by %c64_i32_35 dim 1 : vector<32x128xf32>, i32 -> vector<32x128xf32>
    %cst_36 = arith.constant 1.000000e+00 : f32
    %91 = vector.shape_cast %53 : vector<1x128xi1> to vector<1x128xi1>
    %92 = vector.broadcast %91 : vector<1x128xi1> to vector<32x128xi1>
    %93 = vector.broadcast %cst_36 : f32 to vector<32x128xf32>
    %94 = arith.select %92, %90, %93 : vector<32x128xi1>, vector<32x128xf32>
    %95 = arith.mulf %89, %94 : vector<32x128xf32>
    %c0_37 = arith.constant 0 : index
    %c0_38 = arith.constant 0 : index
    %96 = vector.load %arg5[%c0_37, %c0_38] : memref<32x128xf32, #tpu.memory_space<vmem>>, vector<32x128xf32>
    tpu.vector_store %arg5[%c0_37, %c0_38], %95 {strides = array<i32>} : memref<32x128xf32, #tpu.memory_space<vmem>>, vector<32x128xf32>,
    %c1_i32_39 = arith.constant 1 : i32
    %97 = tpu.dynamic_rotate %1 by %c1_i32_39 dim 0 : vector<16x128xf32>, i32 -> vector<16x128xf32>
    %c1_i32_40 = arith.constant 1 : i32
    %98 = vector.broadcast %c1_i32_40 : i32 to vector<16x128xi32>
    %99 = arith.cmpi sge, %6, %98 : vector<16x128xi32>
    %cst_41 = arith.constant 1.000000e+00 : f32
    %100 = vector.broadcast %cst_41 : f32 to vector<16x128xf32>
    %101 = arith.select %99, %97, %100 : vector<16x128xi1>, vector<16x128xf32>
    %102 = arith.mulf %1, %101 : vector<16x128xf32>
    %c2_i32_42 = arith.constant 2 : i32
    %103 = tpu.dynamic_rotate %102 by %c2_i32_42 dim 0 : vector<16x128xf32>, i32 -> vector<16x128xf32>
    %c2_i32_43 = arith.constant 2 : i32
    %104 = vector.broadcast %c2_i32_43 : i32 to vector<16x128xi32>
    %105 = arith.cmpi sge, %6, %104 : vector<16x128xi32>
    %cst_44 = arith.constant 1.000000e+00 : f32
    %106 = vector.broadcast %cst_44 : f32 to vector<16x128xf32>
    %107 = arith.select %105, %103, %106 : vector<16x128xi1>, vector<16x128xf32>
    %108 = arith.mulf %102, %107 : vector<16x128xf32>
    %c4_i32_45 = arith.constant 4 : i32
    %109 = tpu.dynamic_rotate %108 by %c4_i32_45 dim 0 : vector<16x128xf32>, i32 -> vector<16x128xf32>
    %c4_i32_46 = arith.constant 4 : i32
    %110 = vector.broadcast %c4_i32_46 : i32 to vector<16x128xi32>
    %111 = arith.cmpi sge, %6, %110 : vector<16x128xi32>
    %cst_47 = arith.constant 1.000000e+00 : f32
    %112 = vector.broadcast %cst_47 : f32 to vector<16x128xf32>
    %113 = arith.select %111, %109, %112 : vector<16x128xi1>, vector<16x128xf32>
    %114 = arith.mulf %108, %113 : vector<16x128xf32>
    %c8_i32_48 = arith.constant 8 : i32
    %115 = tpu.dynamic_rotate %114 by %c8_i32_48 dim 0 : vector<16x128xf32>, i32 -> vector<16x128xf32>
    %c8_i32_49 = arith.constant 8 : i32
    %116 = vector.broadcast %c8_i32_49 : i32 to vector<16x128xi32>
    %117 = arith.cmpi sge, %6, %116 : vector<16x128xi32>
    %cst_50 = arith.constant 1.000000e+00 : f32
    %118 = vector.broadcast %cst_50 : f32 to vector<16x128xf32>
    %119 = arith.select %117, %115, %118 : vector<16x128xi1>, vector<16x128xf32>
    %120 = arith.mulf %114, %119 : vector<16x128xf32>
    %c0_51 = arith.constant 0 : index
    %c0_52 = arith.constant 0 : index
    %121 = vector.load %arg6[%c0_51, %c0_52] : memref<16x128xf32, #tpu.memory_space<vmem>>, vector<16x128xf32>
    tpu.vector_store %arg6[%c0_51, %c0_52], %120 {strides = array<i32>} : memref<16x128xf32, #tpu.memory_space<vmem>>, vector<16x128xf32>,
    %c1_i32_53 = arith.constant 1 : i32
    %122 = tpu.dynamic_rotate %1 by %c1_i32_53 dim 1 : vector<16x128xf32>, i32 -> vector<16x128xf32>
    %cst_54 = arith.constant 1.000000e+00 : f32
    %123 = vector.shape_cast %41 : vector<1x128xi1> to vector<1x128xi1>
    %124 = vector.broadcast %123 : vector<1x128xi1> to vector<16x128xi1>
    %125 = vector.broadcast %cst_54 : f32 to vector<16x128xf32>
    %126 = arith.select %124, %122, %125 : vector<16x128xi1>, vector<16x128xf32>
    %127 = arith.mulf %1, %126 : vector<16x128xf32>
    %c2_i32_55 = arith.constant 2 : i32
    %128 = tpu.dynamic_rotate %127 by %c2_i32_55 dim 1 : vector<16x128xf32>, i32 -> vector<16x128xf32>
    %cst_56 = arith.constant 1.000000e+00 : f32
    %129 = vector.shape_cast %43 : vector<1x128xi1> to vector<1x128xi1>
    %130 = vector.broadcast %129 : vector<1x128xi1> to vector<16x128xi1>
    %131 = vector.broadcast %cst_56 : f32 to vector<16x128xf32>
    %132 = arith.select %130, %128, %131 : vector<16x128xi1>, vector<16x128xf32>
    %133 = arith.mulf %127, %132 : vector<16x128xf32>
    %c4_i32_57 = arith.constant 4 : i32
    %134 = tpu.dynamic_rotate %133 by %c4_i32_57 dim 1 : vector<16x128xf32>, i32 -> vector<16x128xf32>
    %cst_58 = arith.constant 1.000000e+00 : f32
    %135 = vector.shape_cast %45 : vector<1x128xi1> to vector<1x128xi1>
    %136 = vector.broadcast %135 : vector<1x128xi1> to vector<16x128xi1>
    %137 = vector.broadcast %cst_58 : f32 to vector<16x128xf32>
    %138 = arith.select %136, %134, %137 : vector<16x128xi1>, vector<16x128xf32>
    %139 = arith.mulf %133, %138 : vector<16x128xf32>
    %c8_i32_59 = arith.constant 8 : i32
    %140 = tpu.dynamic_rotate %139 by %c8_i32_59 dim 1 : vector<16x128xf32>, i32 -> vector<16x128xf32>
    %cst_60 = arith.constant 1.000000e+00 : f32
    %141 = vector.shape_cast %47 : vector<1x128xi1> to vector<1x128xi1>
    %142 = vector.broadcast %141 : vector<1x128xi1> to vector<16x128xi1>
    %143 = vector.broadcast %cst_60 : f32 to vector<16x128xf32>
    %144 = arith.select %142, %140, %143 : vector<16x128xi1>, vector<16x128xf32>
    %145 = arith.mulf %139, %144 : vector<16x128xf32>
    %c16_i32_61 = arith.constant 16 : i32
    %146 = tpu.dynamic_rotate %145 by %c16_i32_61 dim 1 : vector<16x128xf32>, i32 -> vector<16x128xf32>
    %cst_62 = arith.constant 1.000000e+00 : f32
    %147 = vector.shape_cast %49 : vector<1x128xi1> to vector<1x128xi1>
    %148 = vector.broadcast %147 : vector<1x128xi1> to vector<16x128xi1>
    %149 = vector.broadcast %cst_62 : f32 to vector<16x128xf32>
    %150 = arith.select %148, %146, %149 : vector<16x128xi1>, vector<16x128xf32>
    %151 = arith.mulf %145, %150 : vector<16x128xf32>
    %c32_i32_63 = arith.constant 32 : i32
    %152 = tpu.dynamic_rotate %151 by %c32_i32_63 dim 1 : vector<16x128xf32>, i32 -> vector<16x128xf32>
    %cst_64 = arith.constant 1.000000e+00 : f32
    %153 = vector.shape_cast %51 : vector<1x128xi1> to vector<1x128xi1>
    %154 = vector.broadcast %153 : vector<1x128xi1> to vector<16x128xi1>
    %155 = vector.broadcast %cst_64 : f32 to vector<16x128xf32>
    %156 = arith.select %154, %152, %155 : vector<16x128xi1>, vector<16x128xf32>
    %157 = arith.mulf %151, %156 : vector<16x128xf32>
    %c64_i32_65 = arith.constant 64 : i32
    %158 = tpu.dynamic_rotate %157 by %c64_i32_65 dim 1 : vector<16x128xf32>, i32 -> vector<16x128xf32>
    %cst_66 = arith.constant 1.000000e+00 : f32
    %159 = vector.shape_cast %53 : vector<1x128xi1> to vector<1x128xi1>
    %160 = vector.broadcast %159 : vector<1x128xi1> to vector<16x128xi1>
    %161 = vector.broadcast %cst_66 : f32 to vector<16x128xf32>
    %162 = arith.select %160, %158, %161 : vector<16x128xi1>, vector<16x128xf32>
    %163 = arith.mulf %157, %162 : vector<16x128xf32>
    %c0_67 = arith.constant 0 : index
    %c0_68 = arith.constant 0 : index
    %164 = vector.load %arg7[%c0_67, %c0_68] : memref<16x128xf32, #tpu.memory_space<vmem>>, vector<16x128xf32>
    tpu.vector_store %arg7[%c0_67, %c0_68], %163 {strides = array<i32>} : memref<16x128xf32, #tpu.memory_space<vmem>>, vector<16x128xf32>,
    %c1_i32_69 = arith.constant 1 : i32
    %165 = tpu.dynamic_rotate %2 by %c1_i32_69 dim 1 : vector<1x128xf32>, i32 -> vector<1x128xf32>
    %cst_70 = arith.constant 1.000000e+00 : f32
    %166 = vector.broadcast %cst_70 : f32 to vector<1x128xf32>
    %167 = arith.select %41, %165, %166 : vector<1x128xi1>, vector<1x128xf32>
    %168 = arith.mulf %2, %167 : vector<1x128xf32>
    %c2_i32_71 = arith.constant 2 : i32
    %169 = tpu.dynamic_rotate %168 by %c2_i32_71 dim 1 : vector<1x128xf32>, i32 -> vector<1x128xf32>
    %cst_72 = arith.constant 1.000000e+00 : f32
    %170 = vector.broadcast %cst_72 : f32 to vector<1x128xf32>
    %171 = arith.select %43, %169, %170 : vector<1x128xi1>, vector<1x128xf32>
    %172 = arith.mulf %168, %171 : vector<1x128xf32>
    %c4_i32_73 = arith.constant 4 : i32
    %173 = tpu.dynamic_rotate %172 by %c4_i32_73 dim 1 : vector<1x128xf32>, i32 -> vector<1x128xf32>
    %cst_74 = arith.constant 1.000000e+00 : f32
    %174 = vector.broadcast %cst_74 : f32 to vector<1x128xf32>
    %175 = arith.select %45, %173, %174 : vector<1x128xi1>, vector<1x128xf32>
    %176 = arith.mulf %172, %175 : vector<1x128xf32>
    %c8_i32_75 = arith.constant 8 : i32
    %177 = tpu.dynamic_rotate %176 by %c8_i32_75 dim 1 : vector<1x128xf32>, i32 -> vector<1x128xf32>
    %cst_76 = arith.constant 1.000000e+00 : f32
    %178 = vector.broadcast %cst_76 : f32 to vector<1x128xf32>
    %179 = arith.select %47, %177, %178 : vector<1x128xi1>, vector<1x128xf32>
    %180 = arith.mulf %176, %179 : vector<1x128xf32>
    %c16_i32_77 = arith.constant 16 : i32
    %181 = tpu.dynamic_rotate %180 by %c16_i32_77 dim 1 : vector<1x128xf32>, i32 -> vector<1x128xf32>
    %cst_78 = arith.constant 1.000000e+00 : f32
    %182 = vector.broadcast %cst_78 : f32 to vector<1x128xf32>
    %183 = arith.select %49, %181, %182 : vector<1x128xi1>, vector<1x128xf32>
    %184 = arith.mulf %180, %183 : vector<1x128xf32>
    %c32_i32_79 = arith.constant 32 : i32
    %185 = tpu.dynamic_rotate %184 by %c32_i32_79 dim 1 : vector<1x128xf32>, i32 -> vector<1x128xf32>
    %cst_80 = arith.constant 1.000000e+00 : f32
    %186 = vector.broadcast %cst_80 : f32 to vector<1x128xf32>
    %187 = arith.select %51, %185, %186 : vector<1x128xi1>, vector<1x128xf32>
    %188 = arith.mulf %184, %187 : vector<1x128xf32>
    %c64_i32_81 = arith.constant 64 : i32
    %189 = tpu.dynamic_rotate %188 by %c64_i32_81 dim 1 : vector<1x128xf32>, i32 -> vector<1x128xf32>
    %cst_82 = arith.constant 1.000000e+00 : f32
    %190 = vector.broadcast %cst_82 : f32 to vector<1x128xf32>
    %191 = arith.select %53, %189, %190 : vector<1x128xi1>, vector<1x128xf32>
    %192 = arith.mulf %188, %191 : vector<1x128xf32>
    %c0_83 = arith.constant 0 : index
    %c0_84 = arith.constant 0 : index
    %193 = vector.load %arg8[%c0_83, %c0_84] : memref<1x128xf32, #tpu.memory_space<vmem>>, vector<1x128xf32>
    tpu.vector_store %arg8[%c0_83, %c0_84], %192 {strides = array<i32>} : memref<1x128xf32, #tpu.memory_space<vmem>>, vector<1x128xf32>,
    return
  }
}

</mosaic_0001>

<llo_original>
// kernel: model_forward.1
$region0: #{model_forward.1}
  #allocation0 [shape = 'u32[]', space=smem, size = 0x4, offset = 0x4, fixed_abs, tag = 'smem constant byte address 0x4 - core index']
  #allocation1 [shape = 'u32[72,128]{1,0:T(1,128)}', space=vmem, size = 0x9000, scoped, tag = 'internal scratch']
  %s0 = inlined_call_operand.hbm [shape: f32[32,128], index: 0, kind: input, shape index: {}]
  %s1 = inlined_call_operand.hbm [shape: f32[16,128], index: 1, kind: input, shape index: {}]
  %s2 = inlined_call_operand.vmem [shape: f32[1,128], index: 2, kind: input, shape index: {}]
  %s3 = inlined_call_operand.hbm [shape: f32[32,128], index: 3, kind: output, shape index: {0}]
  %s4 = inlined_call_operand.hbm [shape: f32[32,128], index: 4, kind: output, shape index: {1}]
  %s5 = inlined_call_operand.hbm [shape: f32[32,128], index: 5, kind: output, shape index: {2}]
  %s6 = inlined_call_operand.hbm [shape: f32[16,128], index: 6, kind: output, shape index: {3}]
  %s7 = inlined_call_operand.hbm [shape: f32[16,128], index: 7, kind: output, shape index: {4}]
  %s8 = inlined_call_operand.hbm [shape: f32[1,128], index: 8, kind: output, shape index: {5}]
  %9 = xla_tuple %s3, %s4, %s5, %s6, %s7, %s8
  %s10 = sld [smem:[#allocation0]]
  $region70: #{model_forward.1} parent=0
    _
  %s12 = ssub.s32 1, %s10
  %s13 = scalar_select 0, %s12, %s10
  $region1: #{model_forward.1} parent=0
    #allocation2 [shape = 'u8[16384]{0}', space=vmem, size = 0x4000, scoped, tag = 'input window, operand 0, single buffered']
    #allocation3 [shape = 's32[1]{0}', space=sflag, size = 0x4, scoped, tag = 'scoped memory for model_forward.1']
    #allocation4 [shape = 's32[1]{0}', space=sflag, size = 0x4, scoped, tag = 'scoped memory for model_forward.1']
    #allocation5 [shape = 'u8[8192]{0}', space=vmem, size = 0x2000, scoped, tag = 'input window, operand 1, single buffered']
    #allocation6 [shape = 's32[1]{0}', space=sflag, size = 0x4, scoped, tag = 'scoped memory for model_forward.1']
    #allocation7 [shape = 'u8[16384]{0}', space=vmem, size = 0x4000, scoped, tag = 'output window, operand 0, single buffered']
    #allocation8 [shape = 'u8[16384]{0}', space=vmem, size = 0x4000, scoped, tag = 'output window, operand 1, single buffered']
    #allocation9 [shape = 's32[1]{0}', space=sflag, size = 0x4, scoped, tag = 'scoped memory for model_forward.1']
    #allocation10 [shape = 'u8[16384]{0}', space=vmem, size = 0x4000, scoped, tag = 'output window, operand 2, single buffered']
    #allocation11 [shape = 'u8[8192]{0}', space=vmem, size = 0x2000, scoped, tag = 'output window, operand 3, single buffered']
    #allocation12 [shape = 's32[1]{0}', space=sflag, size = 0x4, scoped, tag = 'scoped memory for model_forward.1']
    #allocation13 [shape = 'u8[8192]{0}', space=vmem, size = 0x2000, scoped, tag = 'output window, operand 4, single buffered']
    #allocation14 [shape = 'u8[512]{0}', space=vmem, size = 0x400, scoped, tag = 'output window, operand 5, single buffered']
    #allocation15 [shape = 's32[1]{0}', space=sflag, size = 0x4, scoped, tag = 'scoped memory for model_forward.1']
    %14 = vsyncpa [#allocation3], 0
    %15 = vsyncpa [#allocation6], 0
    %16 = vsyncpa [#allocation4], 0
    %17 = vsyncpa [#allocation9], 0
    %18 = vsyncpa [#allocation12], 0
    %19 = vsyncpa [#allocation15], 0
    // Predicated region
    $region2: #{model_forward.1} parent=1 // pred_check
      _
    $region3: #{model_forward.1} parent=1 // pred_check_branch
      %21 = sbr.rel (0) target = $region5
    $region4: #{model_forward.1} parent=1 // pred_region
      %23 = vsyncadd [#allocation3], 0
      %s24 = sshll.u32 %s0, 4
      %s25 = int_to_ptr.hbm [resolvable:$true] %s24
      %s26 = sshll.u32 [#allocation2], 4
      %s27 = int_to_ptr.vmem [resolvable:$true] %s26
      %32 = dma.hbm_to_vmem [thread:$0]  %s25, 512, %s27, [#allocation3], 128, 128, 8
    $region5: #{model_forward.1} parent=1 // pred_fallthru
      _
    // Predicated region
    $region6: #{model_forward.1} parent=1 // pred_check
      _
    $region7: #{model_forward.1} parent=1 // pred_check_branch
      %34 = sbr.rel (0) target = $region9
    $region8: #{model_forward.1} parent=1 // pred_region
      %36 = vsyncadd [#allocation6], 0
      %s37 = sshll.u32 %s1, 4
      %s38 = int_to_ptr.hbm [resolvable:$true] %s37
      %s39 = sshll.u32 [#allocation5], 4
      %s40 = int_to_ptr.vmem [resolvable:$true] %s39
      %45 = dma.hbm_to_vmem [thread:$0]  %s38, 256, %s40, [#allocation6], 128, 128, 8
    $region9: #{model_forward.1} parent=1 // pred_fallthru
      _
    // Predicated region
    $region10: #{model_forward.1} parent=1 // pred_check
      _
    $region11: #{model_forward.1} parent=1 // pred_check_branch
      %47 = sbr.rel (0) target = $region13
    $region12: #{model_forward.1} parent=1 // pred_region
      _
    $region13: #{model_forward.1} parent=1 // pred_fallthru
      _
    // Predicated region
    $region14: #{model_forward.1} parent=1 // pred_check
      _
    $region15: #{model_forward.1} parent=1 // pred_check_branch
      %49 = sbr.rel (0) target = $region17
    $region16: #{model_forward.1} parent=1 // pred_region
      %51 = dma.done [#allocation3], 512
    $region17: #{model_forward.1} parent=1 // pred_fallthru
      _
    // Predicated region
    $region18: #{model_forward.1} parent=1 // pred_check
      _
    $region19: #{model_forward.1} parent=1 // pred_check_branch
      %53 = sbr.rel (0) target = $region21
    $region20: #{model_forward.1} parent=1 // pred_region
      %55 = dma.done [#allocation6], 256
    $region21: #{model_forward.1} parent=1 // pred_fallthru
      _
    %v56 = vld [vmem:[#allocation2] sm:$0xff]
    %v57 = vld [vmem:[#allocation2 + $0x8] sm:$0xff]
    %v58 = vld [vmem:[#allocation2 + $0x10] sm:$0xff]
    %v59 = vld [vmem:[#allocation2 + $0x18] sm:$0xff]
    %v60 = vld [vmem:[#allocation5] sm:$0xff]
    %v61 = vld [vmem:[#allocation5 + $0x8] sm:$0xff]
    %v62 = vld [vmem:[%s2] sm:$0x1]
    %v63 = vlaneseq
    %v64 = vshrl.u32 %v63, 7
    %v65 = vadd.s32 %v64, 8
    %v66 = vadd.s32 %v64, 16
    %v67 = vadd.s32 %v64, 24
    %v68 = vand.u32 %v64, 7
    %v69 = vand.u32 %v65, 7
    %v70 = vand.u32 %v66, 7
    %v71 = vand.u32 %v67, 7
    %vm72 = vcmp.ge.s32.totalorder %v64, 8
    %vm73 = vcmp.ge.s32.totalorder %v65, 8
    %vm74 = vcmp.ge.s32.totalorder %v66, 8
    %vm75 = vcmp.ge.s32.totalorder %v67, 8
    %v76 = vsel %vm72, %v59, 1.0
    %v77 = vsel %vm73, %v56, 1.0
    %v78 = vsel %vm74, %v57, 1.0
    %v79 = vsel %vm75, %v58, 1.0
    %v80 = vmul.f32 %v56, %v76
    %v81 = vmul.f32 %v57, %v77
    %v82 = vmul.f32 %v58, %v78
    %v83 = vmul.f32 %v59, %v79
    %vm84 = vcmp.ge.s32.totalorder %v64, 16
    %vm85 = vcmp.ge.s32.totalorder %v65, 16
    %vm86 = vcmp.ge.s32.totalorder %v66, 16
    %vm87 = vcmp.ge.s32.totalorder %v67, 16
    %v88 = vsel %vm84, %v82, 1.0
    %v89 = vsel %vm85, %v83, 1.0
    %v90 = vsel %vm86, %v80, 1.0
    %v91 = vsel %vm87, %v81, 1.0
    %v92 = vmul.f32 %v80, %v88
    %v93 = vmul.f32 %v81, %v89
    %v94 = vmul.f32 %v82, %v90
    %v95 = vmul.f32 %v83, %v91
    %96 = vst [vmem:[#allocation7] sm:$0xff] %v92
    %97 = vst [vmem:[#allocation7 + $0x8] sm:$0xff] %v93
    %98 = vst [vmem:[#allocation7 + $0x10] sm:$0xff] %v94
    %99 = vst [vmem:[#allocation7 + $0x18] sm:$0xff] %v95
    %v100 = vrot.slane %v56, 7
    %v101 = vrot.slane %v57, 7
    %v102 = vrot.slane %v58, 7
    %v103 = vrot.slane %v59, 7
    %vm104 = vcmp.lt.s32.totalorder %v64, 1
    %v105 = vsel %vm104, %v102, %v103
    %v106 = vsel %vm104, %v101, %v102
    %v107 = vsel %vm104, %v100, %v101
    %v108 = vsel %vm104, %v103, %v100
    %vm109 = vcmp.ge.s32.totalorder %v68, 1
    %vm110 = vcmp.ge.s32.totalorder %v69, 1
    %vm111 = vcmp.ge.s32.totalorder %v70, 1
    %vm112 = vcmp.ge.s32.totalorder %v71, 1
    %v113 = vsel %vm109, %v108, 1.0
    %v114 = vsel %vm110, %v107, 1.0
    %v115 = vsel %vm111, %v106, 1.0
    %v116 = vsel %vm112, %v105, 1.0
    %v117 = vmul.f32 %v56, %v113
    %v118 = vmul.f32 %v57, %v114
    %v119 = vmul.f32 %v58, %v115
    %v120 = vmul.f32 %v59, %v116
    %v121 = vrot.slane %v117, 6
    %v122 = vrot.slane %v118, 6
    %v123 = vrot.slane %v119, 6
    %v124 = vrot.slane %v120, 6
    %vm125 = vcmp.lt.s32.totalorder %v64, 2
    %v126 = vsel %vm125, %v123, %v124
    %v127 = vsel %vm125, %v122, %v123
    %v128 = vsel %vm125, %v121, %v122
    %v129 = vsel %vm125, %v124, %v121
    %vm130 = vcmp.ge.s32.totalorder %v68, 2
    %vm131 = vcmp.ge.s32.totalorder %v69, 2
    %vm132 = vcmp.ge.s32.totalorder %v70, 2
    %vm133 = vcmp.ge.s32.totalorder %v71, 2
    %v134 = vsel %vm130, %v129, 1.0
    %v135 = vsel %vm131, %v128, 1.0
    %v136 = vsel %vm132, %v127, 1.0
    %v137 = vsel %vm133, %v126, 1.0
    %v138 = vmul.f32 %v117, %v134
    %v139 = vmul.f32 %v118, %v135
    %v140 = vmul.f32 %v119, %v136
    %v141 = vmul.f32 %v120, %v137
    %v142 = vrot.slane %v138, 4
    %v143 = vrot.slane %v139, 4
    %v144 = vrot.slane %v140, 4
    %v145 = vrot.slane %v141, 4
    %vm146 = vcmp.lt.s32.totalorder %v64, 4
    %v147 = vsel %vm146, %v144, %v145
    %v148 = vsel %vm146, %v143, %v144
    %v149 = vsel %vm146, %v142, %v143
    %v150 = vsel %vm146, %v145, %v142
    %vm151 = vcmp.ge.s32.totalorder %v68, 4
    %vm152 = vcmp.ge.s32.totalorder %v69, 4
    %vm153 = vcmp.ge.s32.totalorder %v70, 4
    %vm154 = vcmp.ge.s32.totalorder %v71, 4
    %v155 = vsel %vm151, %v150, 1.0
    %v156 = vsel %vm152, %v149, 1.0
    %v157 = vsel %vm153, %v148, 1.0
    %v158 = vsel %vm154, %v147, 1.0
    %v159 = vmul.f32 %v138, %v155
    %v160 = vmul.f32 %v139, %v156
    %v161 = vmul.f32 %v140, %v157
    %v162 = vmul.f32 %v141, %v158
    %163 = vst [vmem:[#allocation8] sm:$0xff] %v159
    %164 = vst [vmem:[#allocation8 + $0x8] sm:$0xff] %v160
    %165 = vst [vmem:[#allocation8 + $0x10] sm:$0xff] %v161
    %166 = vst [vmem:[#allocation8 + $0x18] sm:$0xff] %v162
    %v167 = vlaneseq
    %v168 = vand.u32 %v167, 127
    %vm169 = vcmp.ge.s32.totalorder %v168, 1
    %vm170 = vcmp.ge.s32.totalorder %v168, 2
    %vm171 = vcmp.ge.s32.totalorder %v168, 4
    %vm172 = vcmp.ge.s32.totalorder %v168, 8
    %vm173 = vcmp.ge.s32.totalorder %v168, 16
    %vm174 = vcmp.ge.s32.totalorder %v168, 32
    %vm175 = vcmp.ge.s32.totalorder %v168, 64
    %176 = vrot.lane.b32.xlu0 %v56, 1
    %v177 = vpop.permute.xlu0 %176
    %178 = vrot.lane.b32.xlu0 %v57, 1
    %v179 = vpop.permute.xlu0 %178
    %180 = vrot.lane.b32.xlu0 %v58, 1
    %v181 = vpop.permute.xlu0 %180
    %182 = vrot.lane.b32.xlu0 %v59, 1
    %v183 = vpop.permute.xlu0 %182
    %v184 = vsel %vm169, 1, 0
    %vm185 = vcmp.eq.s32.totalorder %v184, 1
    %v186 = vsel %vm185, %v177, 1.0
    %v187 = vsel %vm185, %v179, 1.0
    %v188 = vsel %vm185, %v181, 1.0
    %v189 = vsel %vm185, %v183, 1.0
    %v190 = vmul.f32 %v56, %v186
    %v191 = vmul.f32 %v57, %v187
    %v192 = vmul.f32 %v58, %v188
    %v193 = vmul.f32 %v59, %v189
    %194 = vrot.lane.b32.xlu0 %v190, 2
    %v195 = vpop.permute.xlu0 %194
    %196 = vrot.lane.b32.xlu0 %v191, 2
    %v197 = vpop.permute.xlu0 %196
    %198 = vrot.lane.b32.xlu0 %v192, 2
    %v199 = vpop.permute.xlu0 %198
    %200 = vrot.lane.b32.xlu0 %v193, 2
    %v201 = vpop.permute.xlu0 %200
    %v202 = vsel %vm170, 1, 0
    %vm203 = vcmp.eq.s32.totalorder %v202, 1
    %v204 = vsel %vm203, %v195, 1.0
    %v205 = vsel %vm203, %v197, 1.0
    %v206 = vsel %vm203, %v199, 1.0
    %v207 = vsel %vm203, %v201, 1.0
    %v208 = vmul.f32 %v190, %v204
    %v209 = vmul.f32 %v191, %v205
    %v210 = vmul.f32 %v192, %v206
    %v211 = vmul.f32 %v193, %v207
    %212 = vrot.lane.b32.xlu0 %v208, 4
    %v213 = vpop.permute.xlu0 %212
    %214 = vrot.lane.b32.xlu0 %v209, 4
    %v215 = vpop.permute.xlu0 %214
    %216 = vrot.lane.b32.xlu0 %v210, 4
    %v217 = vpop.permute.xlu0 %216
    %218 = vrot.lane.b32.xlu0 %v211, 4
    %v219 = vpop.permute.xlu0 %218
    %v220 = vsel %vm171, 1, 0
    %vm221 = vcmp.eq.s32.totalorder %v220, 1
    %v222 = vsel %vm221, %v213, 1.0
    %v223 = vsel %vm221, %v215, 1.0
    %v224 = vsel %vm221, %v217, 1.0
    %v225 = vsel %vm221, %v219, 1.0
    %v226 = vmul.f32 %v208, %v222
    %v227 = vmul.f32 %v209, %v223
    %v228 = vmul.f32 %v210, %v224
    %v229 = vmul.f32 %v211, %v225
    %230 = vrot.lane.b32.xlu0 %v226, 8
    %v231 = vpop.permute.xlu0 %230
    %232 = vrot.lane.b32.xlu0 %v227, 8
    %v233 = vpop.permute.xlu0 %232
    %234 = vrot.lane.b32.xlu0 %v228, 8
    %v235 = vpop.permute.xlu0 %234
    %236 = vrot.lane.b32.xlu0 %v229, 8
    %v237 = vpop.permute.xlu0 %236
    %v238 = vsel %vm172, 1, 0
    %vm239 = vcmp.eq.s32.totalorder %v238, 1
    %v240 = vsel %vm239, %v231, 1.0
    %v241 = vsel %vm239, %v233, 1.0
    %v242 = vsel %vm239, %v235, 1.0
    %v243 = vsel %vm239, %v237, 1.0
    %v244 = vmul.f32 %v226, %v240
    %v245 = vmul.f32 %v227, %v241
    %v246 = vmul.f32 %v228, %v242
    %v247 = vmul.f32 %v229, %v243
    %248 = vrot.lane.b32.xlu0 %v244, 16
    %v249 = vpop.permute.xlu0 %248
    %250 = vrot.lane.b32.xlu0 %v245, 16
    %v251 = vpop.permute.xlu0 %250
    %252 = vrot.lane.b32.xlu0 %v246, 16
    %v253 = vpop.permute.xlu0 %252
    %254 = vrot.lane.b32.xlu0 %v247, 16
    %v255 = vpop.permute.xlu0 %254
    %v256 = vsel %vm173, 1, 0
    %vm257 = vcmp.eq.s32.totalorder %v256, 1
    %v258 = vsel %vm257, %v249, 1.0
    %v259 = vsel %vm257, %v251, 1.0
    %v260 = vsel %vm257, %v253, 1.0
    %v261 = vsel %vm257, %v255, 1.0
    %v262 = vmul.f32 %v244, %v258
    %v263 = vmul.f32 %v245, %v259
    %v264 = vmul.f32 %v246, %v260
    %v265 = vmul.f32 %v247, %v261
    %266 = vrot.lane.b32.xlu0 %v262, 32
    %v267 = vpop.permute.xlu0 %266
    %268 = vrot.lane.b32.xlu0 %v263, 32
    %v269 = vpop.permute.xlu0 %268
    %270 = vrot.lane.b32.xlu0 %v264, 32
    %v271 = vpop.permute.xlu0 %270
    %272 = vrot.lane.b32.xlu0 %v265, 32
    %v273 = vpop.permute.xlu0 %272
    %v274 = vsel %vm174, 1, 0
    %vm275 = vcmp.eq.s32.totalorder %v274, 1
    %v276 = vsel %vm275, %v267, 1.0
    %v277 = vsel %vm275, %v269, 1.0
    %v278 = vsel %vm275, %v271, 1.0
    %v279 = vsel %vm275, %v273, 1.0
    %v280 = vmul.f32 %v262, %v276
    %v281 = vmul.f32 %v263, %v277
    %v282 = vmul.f32 %v264, %v278
    %v283 = vmul.f32 %v265, %v279
    %284 = vrot.lane.b32.xlu0 %v280, 64
    %v285 = vpop.permute.xlu0 %284
    %286 = vrot.lane.b32.xlu0 %v281, 64
    %v287 = vpop.permute.xlu0 %286
    %288 = vrot.lane.b32.xlu0 %v282, 64
    %v289 = vpop.permute.xlu0 %288
    %290 = vrot.lane.b32.xlu0 %v283, 64
    %v291 = vpop.permute.xlu0 %290
    %v292 = vsel %vm175, 1, 0
    %vm293 = vcmp.eq.s32.totalorder %v292, 1
    %v294 = vsel %vm293, %v285, 1.0
    %v295 = vsel %vm293, %v287, 1.0
    %v296 = vsel %vm293, %v289, 1.0
    %v297 = vsel %vm293, %v291, 1.0
    %v298 = vmul.f32 %v280, %v294
    %v299 = vmul.f32 %v281, %v295
    %v300 = vmul.f32 %v282, %v296
    %v301 = vmul.f32 %v283, %v297
    %302 = vst [vmem:[#allocation10] sm:$0xff] %v298
    %303 = vst [vmem:[#allocation10 + $0x8] sm:$0xff] %v299
    %304 = vst [vmem:[#allocation10 + $0x10] sm:$0xff] %v300
    %305 = vst [vmem:[#allocation10 + $0x18] sm:$0xff] %v301
    %v306 = vrot.slane %v60, 7
    %v307 = vrot.slane %v61, 7
    %v308 = vsel %vm104, %v306, %v307
    %v309 = vsel %vm104, %v307, %v306
    %vm310 = vcmp.ge.s32.totalorder %v64, 1
    %vm311 = vcmp.ge.s32.totalorder %v65, 1
    %v312 = vsel %vm310, %v309, 1.0
    %v313 = vsel %vm311, %v308, 1.0
    %v314 = vmul.f32 %v60, %v312
    %v315 = vmul.f32 %v61, %v313
    %v316 = vrot.slane %v314, 6
    %v317 = vrot.slane %v315, 6
    %v318 = vsel %vm125, %v316, %v317
    %v319 = vsel %vm125, %v317, %v316
    %vm320 = vcmp.ge.s32.totalorder %v64, 2
    %vm321 = vcmp.ge.s32.totalorder %v65, 2
    %v322 = vsel %vm320, %v319, 1.0
    %v323 = vsel %vm321, %v318, 1.0
    %v324 = vmul.f32 %v314, %v322
    %v325 = vmul.f32 %v315, %v323
    %v326 = vrot.slane %v324, 4
    %v327 = vrot.slane %v325, 4
    %v328 = vsel %vm146, %v326, %v327
    %v329 = vsel %vm146, %v327, %v326
    %vm330 = vcmp.ge.s32.totalorder %v64, 4
    %vm331 = vcmp.ge.s32.totalorder %v65, 4
    %v332 = vsel %vm330, %v329, 1.0
    %v333 = vsel %vm331, %v328, 1.0
    %v334 = vmul.f32 %v324, %v332
    %v335 = vmul.f32 %v325, %v333
    %v336 = vsel %vm72, %v335, 1.0
    %v337 = vsel %vm73, %v334, 1.0
    %v338 = vmul.f32 %v334, %v336
    %v339 = vmul.f32 %v335, %v337
    %340 = vst [vmem:[#allocation11] sm:$0xff] %v338
    %341 = vst [vmem:[#allocation11 + $0x8] sm:$0xff] %v339
    %342 = vrot.lane.b32.xlu0 %v60, 1
    %v343 = vpop.permute.xlu0 %342
    %344 = vrot.lane.b32.xlu0 %v61, 1
    %v345 = vpop.permute.xlu0 %344
    %v346 = vsel %vm185, %v343, 1.0
    %v347 = vsel %vm185, %v345, 1.0
    %v348 = vmul.f32 %v60, %v346
    %v349 = vmul.f32 %v61, %v347
    %350 = vrot.lane.b32.xlu0 %v348, 2
    %v351 = vpop.permute.xlu0 %350
    %352 = vrot.lane.b32.xlu0 %v349, 2
    %v353 = vpop.permute.xlu0 %352
    %v354 = vsel %vm203, %v351, 1.0
    %v355 = vsel %vm203, %v353, 1.0
    %v356 = vmul.f32 %v348, %v354
    %v357 = vmul.f32 %v349, %v355
    %358 = vrot.lane.b32.xlu0 %v356, 4
    %v359 = vpop.permute.xlu0 %358
    %360 = vrot.lane.b32.xlu0 %v357, 4
    %v361 = vpop.permute.xlu0 %360
    %v362 = vsel %vm221, %v359, 1.0
    %v363 = vsel %vm221, %v361, 1.0
    %v364 = vmul.f32 %v356, %v362
    %v365 = vmul.f32 %v357, %v363
    %366 = vrot.lane.b32.xlu0 %v364, 8
    %v367 = vpop.permute.xlu0 %366
    %368 = vrot.lane.b32.xlu0 %v365, 8
    %v369 = vpop.permute.xlu0 %368
    %v370 = vsel %vm239, %v367, 1.0
    %v371 = vsel %vm239, %v369, 1.0
    %v372 = vmul.f32 %v364, %v370
    %v373 = vmul.f32 %v365, %v371
    %374 = vrot.lane.b32.xlu0 %v372, 16
    %v375 = vpop.permute.xlu0 %374
    %376 = vrot.lane.b32.xlu0 %v373, 16
    %v377 = vpop.permute.xlu0 %376
    %v378 = vsel %vm257, %v375, 1.0
    %v379 = vsel %vm257, %v377, 1.0
    %v380 = vmul.f32 %v372, %v378
    %v381 = vmul.f32 %v373, %v379
    %382 = vrot.lane.b32.xlu0 %v380, 32
    %v383 = vpop.permute.xlu0 %382
    %384 = vrot.lane.b32.xlu0 %v381, 32
    %v385 = vpop.permute.xlu0 %384
    %v386 = vsel %vm275, %v383, 1.0
    %v387 = vsel %vm275, %v385, 1.0
    %v388 = vmul.f32 %v380, %v386
    %v389 = vmul.f32 %v381, %v387
    %390 = vrot.lane.b32.xlu0 %v388, 64
    %v391 = vpop.permute.xlu0 %390
    %392 = vrot.lane.b32.xlu0 %v389, 64
    %v393 = vpop.permute.xlu0 %392
    %v394 = vsel %vm293, %v391, 1.0
    %v395 = vsel %vm293, %v393, 1.0
    %v396 = vmul.f32 %v388, %v394
    %v397 = vmul.f32 %v389, %v395
    %398 = vst [vmem:[#allocation13] sm:$0xff] %v396
    %399 = vst [vmem:[#allocation13 + $0x8] sm:$0xff] %v397
    %400 = vrot.lane.b32.xlu0 %v62, 1
    %v401 = vpop.permute.xlu0 %400
    %v402 = vsel %vm169, %v401, 1.0
    %v403 = vmul.f32 %v62, %v402
    %404 = vrot.lane.b32.xlu0 %v403, 2
    %v405 = vpop.permute.xlu0 %404
    %v406 = vsel %vm170, %v405, 1.0
    %v407 = vmul.f32 %v403, %v406
    %408 = vrot.lane.b32.xlu0 %v407, 4
    %v409 = vpop.permute.xlu0 %408
    %v410 = vsel %vm171, %v409, 1.0
    %v411 = vmul.f32 %v407, %v410
    %412 = vrot.lane.b32.xlu0 %v411, 8
    %v413 = vpop.permute.xlu0 %412
    %v414 = vsel %vm172, %v413, 1.0
    %v415 = vmul.f32 %v411, %v414
    %416 = vrot.lane.b32.xlu0 %v415, 16
    %v417 = vpop.permute.xlu0 %416
    %v418 = vsel %vm173, %v417, 1.0
    %v419 = vmul.f32 %v415, %v418
    %420 = vrot.lane.b32.xlu0 %v419, 32
    %v421 = vpop.permute.xlu0 %420
    %v422 = vsel %vm174, %v421, 1.0
    %v423 = vmul.f32 %v419, %v422
    %424 = vrot.lane.b32.xlu0 %v423, 64
    %v425 = vpop.permute.xlu0 %424
    %v426 = vsel %vm175, %v425, 1.0
    %v427 = vmul.f32 %v423, %v426
    %428 = vst [vmem:[#allocation14] sm:$0x1] %v427
    // Predicated region
    $region22: #{model_forward.1} parent=1 // pred_check
      _
    $region23: #{model_forward.1} parent=1 // pred_check_branch
      %430 = sbr.rel (0) target = $region25
    $region24: #{model_forward.1} parent=1 // pred_region
      %432 = vsyncadd [#allocation4], 0
      %s433 = sshll.u32 [#allocation7], 4
      %s434 = int_to_ptr.vmem [resolvable:$true] %s433
      %s435 = sshll.u32 %s3, 4
      %s436 = int_to_ptr.hbm [resolvable:$true] %s435
      %441 = dma.vmem_to_hbm [thread:$0]  %s434, 512, %s436, [#allocation4], 128, 128, 8
    $region25: #{model_forward.1} parent=1 // pred_fallthru
      _
    // Predicated region
    $region26: #{model_forward.1} parent=1 // pred_check
      _
    $region27: #{model_forward.1} parent=1 // pred_check_branch
      %443 = sbr.rel (0) target = $region29
    $region28: #{model_forward.1} parent=1 // pred_region
      %445 = vsyncadd [#allocation9], 0
      %s446 = sshll.u32 [#allocation8], 4
      %s447 = int_to_ptr.vmem [resolvable:$true] %s446
      %s448 = sshll.u32 %s4, 4
      %s449 = int_to_ptr.hbm [resolvable:$true] %s448
      %454 = dma.vmem_to_hbm [thread:$0]  %s447, 512, %s449, [#allocation9], 128, 128, 8
    $region29: #{model_forward.1} parent=1 // pred_fallthru
      _
    // Predicated region
    $region30: #{model_forward.1} parent=1 // pred_check
      _
    $region31: #{model_forward.1} parent=1 // pred_check_branch
      %456 = sbr.rel (0) target = $region33
    $region32: #{model_forward.1} parent=1 // pred_region
      %458 = vsyncadd [#allocation9], 0
      %s459 = sshll.u32 [#allocation10], 4
      %s460 = int_to_ptr.vmem [resolvable:$true] %s459
      %s461 = sshll.u32 %s5, 4
      %s462 = int_to_ptr.hbm [resolvable:$true] %s461
      %467 = dma.vmem_to_hbm [thread:$0]  %s460, 512, %s462, [#allocation9], 128, 128, 8
    $region33: #{model_forward.1} parent=1 // pred_fallthru
      _
    // Predicated region
    $region34: #{model_forward.1} parent=1 // pred_check
      _
    $region35: #{model_forward.1} parent=1 // pred_check_branch
      %469 = sbr.rel (0) target = $region37
    $region36: #{model_forward.1} parent=1 // pred_region
      %471 = vsyncadd [#allocation12], 0
      %s472 = sshll.u32 [#allocation11], 4
      %s473 = int_to_ptr.vmem [resolvable:$true] %s472
      %s474 = sshll.u32 %s6, 4
      %s475 = int_to_ptr.hbm [resolvable:$true] %s474
      %480 = dma.vmem_to_hbm [thread:$0]  %s473, 256, %s475, [#allocation12], 128, 128, 8
    $region37: #{model_forward.1} parent=1 // pred_fallthru
      _
    // Predicated region
    $region38: #{model_forward.1} parent=1 // pred_check
      _
    $region39: #{model_forward.1} parent=1 // pred_check_branch
      %482 = sbr.rel (0) target = $region41
    $region40: #{model_forward.1} parent=1 // pred_region
      %484 = vsyncadd [#allocation12], 0
      %s485 = sshll.u32 [#allocation13], 4
      %s486 = int_to_ptr.vmem [resolvable:$true] %s485
      %s487 = sshll.u32 %s7, 4
      %s488 = int_to_ptr.hbm [resolvable:$true] %s487
      %493 = dma.vmem_to_hbm [thread:$0]  %s486, 256, %s488, [#allocation12], 128, 128, 8
    $region41: #{model_forward.1} parent=1 // pred_fallthru
      _
    // Predicated region
    $region42: #{model_forward.1} parent=1 // pred_check
      _
    $region43: #{model_forward.1} parent=1 // pred_check_branch
      %495 = sbr.rel (0) target = $region45
    $region44: #{model_forward.1} parent=1 // pred_region
      %497 = vsyncadd [#allocation15], 0
      %s499 = sshll.u32 [#allocation14], 4
      %s500 = int_to_ptr.vmem [resolvable:$true] %s499
      %s501 = sshll.u32 %s8, 4
      %s502 = int_to_ptr.hbm [resolvable:$true] %s501
      %504 = dma.vmem_to_hbm [thread:$0]  %s500, 16, %s502, [#allocation15]
    $region45: #{model_forward.1} parent=1 // pred_fallthru
      _
    // Predicated region
    $region46: #{model_forward.1} parent=1 // pred_check
      _
    $region47: #{model_forward.1} parent=1 // pred_check_branch
      %506 = sbr.rel (0) target = $region49
    $region48: #{model_forward.1} parent=1 // pred_region
      %508 = dma.done [#allocation4], 512
    $region49: #{model_forward.1} parent=1 // pred_fallthru
      _
    // Predicated region
    $region50: #{model_forward.1} parent=1 // pred_check
      _
    $region51: #{model_forward.1} parent=1 // pred_check_branch
      %510 = sbr.rel (0) target = $region53
    $region52: #{model_forward.1} parent=1 // pred_region
      %512 = dma.done [#allocation9], 512
    $region53: #{model_forward.1} parent=1 // pred_fallthru
      _
    // Predicated region
    $region54: #{model_forward.1} parent=1 // pred_check
      _
    $region55: #{model_forward.1} parent=1 // pred_check_branch
      %514 = sbr.rel (0) target = $region57
    $region56: #{model_forward.1} parent=1 // pred_region
      %516 = dma.done [#allocation9], 512
    $region57: #{model_forward.1} parent=1 // pred_fallthru
      _
    // Predicated region
    $region58: #{model_forward.1} parent=1 // pred_check
      _
    $region59: #{model_forward.1} parent=1 // pred_check_branch
      %518 = sbr.rel (0) target = $region61
    $region60: #{model_forward.1} parent=1 // pred_region
      %520 = dma.done [#allocation12], 256
    $region61: #{model_forward.1} parent=1 // pred_fallthru
      _
    // Predicated region
    $region62: #{model_forward.1} parent=1 // pred_check
      _
    $region63: #{model_forward.1} parent=1 // pred_check_branch
      %522 = sbr.rel (0) target = $region65
    $region64: #{model_forward.1} parent=1 // pred_region
      %524 = dma.done [#allocation12], 256
    $region65: #{model_forward.1} parent=1 // pred_fallthru
      _
    // Predicated region
    $region66: #{model_forward.1} parent=1 // pred_check
      _
    $region67: #{model_forward.1} parent=1 // pred_check_branch
      %526 = sbr.rel (0) target = $region69
    $region68: #{model_forward.1} parent=1 // pred_region
      %528 = dma.done [#allocation15], 16
    $region69: #{model_forward.1} parent=1 // pred_fallthru
      _
    %529 = vsyncpa [#allocation3], 1
    %530 = vsyncpa [#allocation6], 1
    %531 = vsyncpa [#allocation4], 1
    %532 = vsyncpa [#allocation9], 1
    %533 = vsyncpa [#allocation12], 1
    %534 = vsyncpa [#allocation15], 1

</llo_original>
